<compile_context>
chip_gen: v5e
topology: v5e:2x2
jax: 0.10.0
libtpu: 0.0.40
codegen_flags: <defaults>
</compile_context>

<pallas_src>
import functools

import jax
import jax.numpy as jnp
from jax import lax
from jax.experimental import pallas as pl
from jax.experimental.pallas import tpu as pltpu


def _binconv1d_kernel(x_ref, w_ref, o_ref, *, stride, dilation, k_taps,
                      fuse_taps, single_l_tile):
    # x_ref: (1, C_in, L_x) bf16
    # w_ref: (C_out, K*C_in) bf16 if fuse_taps else (K, C_out, C_in) bf16
    # o_ref: (1, C_out, TL)   (output dtype; f32 here)
    c_in = x_ref.shape[1]
    c_out = o_ref.shape[1]
    tl = o_ref.shape[2]
    span = (tl - 1) * stride + 1                 # per-tap window before striding
    x_win = span + dilation * (k_taps - 1)       # receptive field of this tile

    if single_l_tile:
        off = 0                                  # fully static path (one L tile)
    else:
        off = pl.multiple_of(pl.program_id(1) * (tl * stride), tl * stride)

    # One contiguous load of the whole window for this tile.
    xw = x_ref[0, :, pl.ds(off, x_win)]          # (C_in, x_win)

    # Per-tap views taken in-register (static offsets; strided only if stride>1).
    taps = []
    for k in range(k_taps):                      # K is small and static
        lo = k * dilation
        taps.append(lax.slice(xw, (0, lo), (c_in, lo + span), (1, stride)))  # (C_in, TL)

    if fuse_taps:
        # im2col fusion: one MXU matmul with contraction K*C_in.
        slab = taps[0] if k_taps == 1 else jnp.concatenate(taps, axis=0)     # (K*C_in, TL)
        acc = jnp.dot(w_ref[...], slab, preferred_element_type=jnp.float32)  # (C_out, TL)
    else:
        # K small MXU pushes (contraction C_in); safe for any C_in alignment.
        acc = jnp.zeros((c_out, tl), jnp.float32)
        for k in range(k_taps):
            acc = acc + jnp.dot(w_ref[k], taps[k], preferred_element_type=jnp.float32)

    o_ref[0] = acc.astype(o_ref.dtype)


def bin_conv1d(x_ncl, weights_real, *, stride=1, padding=0, dilation=1,
               groups=1, tile_l=512):
    """BinConv1d forward. x_ncl: (N, C_in, L); weights_real: (C_out, C_in, K)."""
    assert groups == 1  # TODO(synk): grouped conv not implemented in the kernel
    N, C_in, L = x_ncl.shape
    C_out, C_in_w, K = weights_real.shape
    assert C_in_w == C_in
    out_dtype = x_ncl.dtype

    # Binarize once in the wrapper (sign of clamped weights; sign(0)==0 like
    # torch.sign). +-1/0 are exact in bf16, so the cast below is lossless.
    w_bin = jnp.sign(jnp.clip(weights_real, -1.0, 1.0))

    L_in = L + 2 * padding
    L_out = (L_in - dilation * (K - 1) - 1) // stride + 1
    assert L_out > 0

    # L_out lane tiling: tile must be a multiple of 128, or the full L_out.
    if L_out <= tile_l:
        tl, n_lt = L_out, 1
    else:
        tl = max(128, tile_l - tile_l % 128)
        n_lt = pl.cdiv(L_out, tl)

    # Right-pad so the (possibly overhanging) last tile's window read stays in
    # bounds; Pallas masks the overhanging part of the output writeback.
    # TODO(synk): conv `padding` is zero-filled with jnp.pad here (one extra HBM
    # pass when padding > 0); could be moved in-kernel with masked edge tiles.
    x_need = (n_lt * tl - 1) * stride + dilation * (K - 1) + 1
    pad_lo, pad_hi = padding, padding + max(0, x_need - L_in)
    x_p = x_ncl
    if pad_lo or pad_hi:
        x_p = jnp.pad(x_p, ((0, 0), (0, 0), (pad_lo, pad_hi)))
    x_p = x_p.astype(jnp.bfloat16)
    L_x = x_p.shape[2]
    # TODO(synk): the whole (C_in, L_x) row is held in VMEM per batch element;
    # for very long L, switch the x block to halo-tiled windows to bound VMEM
    # (relevant for v7x's 64 MiB VMEM).

    fuse_taps = (K > 1) and (C_in % 16 == 0) and (C_in < 128)
    if fuse_taps:
        # (C_out, K*C_in), tap-major / channel-minor, matching the kernel slab.
        w_pre = jnp.transpose(w_bin, (0, 2, 1)).reshape(C_out, K * C_in)
        w_spec = pl.BlockSpec((C_out, K * C_in), lambda n, lt: (0, 0))
    else:
        w_pre = jnp.transpose(w_bin, (2, 0, 1))            # (K, C_out, C_in)
        w_spec = pl.BlockSpec((K, C_out, C_in), lambda n, lt: (0, 0, 0))
    w_pre = w_pre.astype(jnp.bfloat16)

    kernel = functools.partial(
        _binconv1d_kernel, stride=stride, dilation=dilation, k_taps=K,
        fuse_taps=fuse_taps, single_l_tile=(n_lt == 1))

    out = pl.pallas_call(
        kernel,
        out_shape=jax.ShapeDtypeStruct((N, C_out, L_out), out_dtype),
        grid_spec=pltpu.PrefetchScalarGridSpec(
            num_scalar_prefetch=0,
            grid=(N, n_lt),          # L tiles innermost: x row reused across them
            in_specs=[
                pl.BlockSpec((1, C_in, L_x), lambda n, lt: (n, 0, 0)),
                w_spec,
            ],
            out_specs=pl.BlockSpec((1, C_out, tl), lambda n, lt: (n, 0, lt)),
        ),
        compiler_params=pltpu.CompilerParams(
            dimension_semantics=("parallel", "parallel")),
    )(x_p, w_pre)
    return out


if __name__ == "__main__":
    # Small shapes consistent with the module: N=2, C_in=4, C_out=8, L=16, K=3.
    N, C_in, C_out, L, K = 2, 4, 8, 16, 3
    key = jax.random.PRNGKey(0)
    kx, kw = jax.random.split(key)

    x = jax.random.normal(kx, (N, C_in, L), dtype=jnp.float32)

    # Deterministic kaiming_normal_-like init for weights_real (fan_in = C_in*K).
    fan_in = C_in * K
    std = (2.0 / fan_in) ** 0.5
    weights_real = std * jax.random.normal(kw, (C_out, C_in, K), dtype=jnp.float32)

    out = bin_conv1d(x, weights_real, stride=1, padding=0, dilation=1, groups=1)
    out = jax.block_until_ready(out)

    # Pure-JAX references: conv1d with binarized weights.
    w_bin_ref = jnp.sign(jnp.clip(weights_real, -1.0, 1.0))
    conv = functools.partial(
        lax.conv_general_dilated, window_strides=(1,), padding="VALID",
        dimension_numbers=("NCH", "OIH", "NCH"), precision=lax.Precision.HIGHEST)
    ref_f32 = conv(x, w_bin_ref)
    # Tight check vs a reference that sees the same bf16-cast activations.
    ref_bf16_x = conv(x.astype(jnp.bfloat16).astype(jnp.float32), w_bin_ref)

    assert out.shape == (N, C_out, L - K + 1), out.shape
    assert out.dtype == x.dtype
    assert jnp.allclose(out, ref_bf16_x, atol=1e-4, rtol=1e-4), \
        jnp.max(jnp.abs(out - ref_bf16_x))
    assert jnp.allclose(out, ref_f32, atol=5e-2, rtol=5e-2), \
        jnp.max(jnp.abs(out - ref_f32))

    print("KERNEL_OK")
</pallas_src>

<mosaic_0001>
module attributes {stable_mosaic.version = 11 : i64} {
  func.func @_binconv1d_kernel(%arg0: i32, %arg1: i32, %arg2: memref<1x4x16xbf16, #tpu.memory_space<vmem>>, %arg3: memref<3x8x4xbf16, #tpu.memory_space<vmem>>, %arg4: memref<1x8x14xf32, #tpu.memory_space<vmem>>) attributes {dimension_semantics = [#tpu.dimension_semantics<parallel>, #tpu.dimension_semantics<parallel>], iteration_bounds = array<i64: 2, 1>, scalar_prefetch = 0 : i64, scratch_operands = 0 : i64, tpu.core_type = #tpu.core_type<tc>, window_params = [{transform_indices = @transform_0, window_bounds = array<i64: 1, 4, 16>}, {pipeline_mode = #tpu.pipeline_mode<synchronous>, transform_indices = @transform_1, window_bounds = array<i64: 3, 8, 4>}, {transform_indices = @transform_2, window_bounds = array<i64: 1, 8, 14>}]} {
    %c0 = arith.constant 0 : index
    %c0_0 = arith.constant 0 : index
    %c0_1 = arith.constant 0 : index
    %0 = vector.load %arg2[%c0, %c0_0, %c0_1] : memref<1x4x16xbf16, #tpu.memory_space<vmem>>, vector<1x4x16xbf16>
    %1 = vector.shape_cast %0 : vector<1x4x16xbf16> to vector<4x16xbf16>
    %2 = vector.extract_strided_slice %1 {offsets = [0, 0], sizes = [4, 14], strides = [1, 1]} : vector<4x16xbf16> to vector<4x14xbf16>
    %3 = vector.extract_strided_slice %1 {offsets = [0, 1], sizes = [4, 14], strides = [1, 1]} : vector<4x16xbf16> to vector<4x14xbf16>
    %4 = vector.extract_strided_slice %1 {offsets = [0, 2], sizes = [4, 14], strides = [1, 1]} : vector<4x16xbf16> to vector<4x14xbf16>
    %cst = arith.constant 0.000000e+00 : f32
    %5 = vector.broadcast %cst : f32 to vector<8x14xf32>
    %c0_2 = arith.constant 0 : index
    %c0_3 = arith.constant 0 : index
    %c0_4 = arith.constant 0 : index
    %6 = vector.load %arg3[%c0_2, %c0_3, %c0_4] : memref<3x8x4xbf16, #tpu.memory_space<vmem>>, vector<1x8x4xbf16>
    %7 = vector.shape_cast %6 : vector<1x8x4xbf16> to vector<8x4xbf16>
    %cst_5 = arith.constant dense<0.000000e+00> : vector<8x14xf32>
    %8 = tpu.matmul %7, %2, %cst_5 {dimension_numbers = #tpu.dot_dimension_numbers<[1], [0], [0], [1], [0, 0, 1, 1], [], []>} : vector<8x4xbf16>, vector<4x14xbf16>, vector<8x14xf32> -> vector<8x14xf32>
    %9 = arith.addf %5, %8 : vector<8x14xf32>
    %c1 = arith.constant 1 : index
    %c0_6 = arith.constant 0 : index
    %c0_7 = arith.constant 0 : index
    %10 = vector.load %arg3[%c1, %c0_6, %c0_7] : memref<3x8x4xbf16, #tpu.memory_space<vmem>>, vector<1x8x4xbf16>
    %11 = vector.shape_cast %10 : vector<1x8x4xbf16> to vector<8x4xbf16>
    %cst_8 = arith.constant dense<0.000000e+00> : vector<8x14xf32>
    %12 = tpu.matmul %11, %3, %cst_8 {dimension_numbers = #tpu.dot_dimension_numbers<[1], [0], [0], [1], [0, 0, 1, 1], [], []>} : vector<8x4xbf16>, vector<4x14xbf16>, vector<8x14xf32> -> vector<8x14xf32>
    %13 = arith.addf %9, %12 : vector<8x14xf32>
    %c2 = arith.constant 2 : index
    %c0_9 = arith.constant 0 : index
    %c0_10 = arith.constant 0 : index
    %14 = vector.load %arg3[%c2, %c0_9, %c0_10] : memref<3x8x4xbf16, #tpu.memory_space<vmem>>, vector<1x8x4xbf16>
    %15 = vector.shape_cast %14 : vector<1x8x4xbf16> to vector<8x4xbf16>
    %cst_11 = arith.constant dense<0.000000e+00> : vector<8x14xf32>
    %16 = tpu.matmul %15, %4, %cst_11 {dimension_numbers = #tpu.dot_dimension_numbers<[1], [0], [0], [1], [0, 0, 1, 1], [], []>} : vector<8x4xbf16>, vector<4x14xbf16>, vector<8x14xf32> -> vector<8x14xf32>
    %17 = arith.addf %13, %16 : vector<8x14xf32>
    %c0_12 = arith.constant 0 : index
    %c0_13 = arith.constant 0 : index
    %c0_14 = arith.constant 0 : index
    %18 = vector.load %arg4[%c0_12, %c0_13, %c0_14] : memref<1x8x14xf32, #tpu.memory_space<vmem>>, vector<1x8x14xf32>
    %19 = vector.shape_cast %18 : vector<1x8x14xf32> to vector<8x14xf32>
    %20 = vector.shape_cast %17 : vector<8x14xf32> to vector<1x8x14xf32>
    tpu.vector_store %arg4[%c0_12, %c0_13, %c0_14], %20 {strides = array<i32>} : memref<1x8x14xf32, #tpu.memory_space<vmem>>, vector<1x8x14xf32>,
    return
  }
  func.func @transform_0(%arg0: i32, %arg1: i32) -> (i32, i32, i32) {
    %c0_i32 = arith.constant 0 : i32
    %c0_i32_0 = arith.constant 0 : i32
    %c0_i32_1 = arith.constant 0 : i32
    return %arg0, %c0_i32, %c0_i32_0 : i32, i32, i32
  }
  func.func @transform_1(%arg0: i32, %arg1: i32) -> (i32, i32, i32) {
    %c0_i32 = arith.constant 0 : i32
    %c0_i32_0 = arith.constant 0 : i32
    %c0_i32_1 = arith.constant 0 : i32
    %c0_i32_2 = arith.constant 0 : i32
    return %c0_i32, %c0_i32_0, %c0_i32_1 : i32, i32, i32
  }
  func.func @transform_2(%arg0: i32, %arg1: i32) -> (i32, i32, i32) {
    %c0_i32 = arith.constant 0 : i32
    %c0_i32_0 = arith.constant 0 : i32
    return %arg0, %c0_i32, %arg1 : i32, i32, i32
  }
}

</mosaic_0001>

<llo_original>
// kernel: tpu_custom_call.1
$region0: #{tpu_custom_call.1}
  #allocation0 [shape = 'u32[]', space=smem, size = 0x4, offset = 0x4, fixed_abs, tag = 'smem constant byte address 0x4 - core index']
  #allocation1 [shape = 'u32[72,128]{1,0:T(1,128)}', space=vmem, size = 0x9000, scoped, tag = 'internal scratch']
  %s0 = inlined_call_operand.vmem [shape: bf16[2,4,16], index: 0, kind: input, shape index: {}]
  %s1 = inlined_call_operand.vmem [shape: bf16[3,8,4], index: 1, kind: input, shape index: {}]
  %s2 = inlined_call_operand.hbm [shape: f32[2,8,14], index: 2, kind: output, shape index: {}]
  %s3 = sld [smem:[#allocation0]]
  $region41: #{tpu_custom_call.1} parent=0
    _
  %s5 = ssub.s32 1, %s3
  %s6 = scalar_select 0, %s5, %s3
  $region1: #{tpu_custom_call.1} parent=0
    #allocation2 [shape = 'u8[8192]{0}', space=vmem, size = 0x2000, scoped, tag = 'output window, operand 0']
    #allocation3 [shape = 's32[2]{0}', space=sflag, size = 0x8, scoped, tag = 'scoped memory for tpu_custom_call.1']
    %7 = vsyncpa [#allocation3], 0
    %s8 = scalar_lea.sflag [#allocation3], 1
    %9 = vsyncpa %s8, 0
    loop: start=0, step=1, limit=4
    $region2: #{tpu_custom_call.1} parent=1 // loop_pre_header
      _
    $region3: #{tpu_custom_call.1} parent=1 // loop_header
      %s11 = sphi 0, %s15
      %p12 = scmp.ge.s32.totalorder %s11, 4
      %s18 = sphi 0, %s30
      %s19 = sphi 0, %s26
      %s20 = sphi 0, %s18
      %s21 = sphi 0, %s19
      %s22 = sphi 0, %s20
      %s23 = sphi 0, %s21
      %s33 = sphi 0, %s35
      %s36 = sphi 0, %s33
      %s37 = sphi 0, %s36
      %s53 = sphi 0, %s37
      %s57 = sphi 0, %s57
      %s59 = sphi 0, %s57
      %s60 = sphi 0, %s59
      %s74 = sphi 0, %s60
      %s82 = sphi 0, %s84
      %s85 = sphi 0, %s82
      %s86 = sphi 0, %s85
      %s102 = sphi 0, %s86
    $region4: #{tpu_custom_call.1} parent=1 // loop_header_branch
      %14 = sbr.rel (%p12) target = $region8
    $region5: #{tpu_custom_call.1} parent=1 // loop_body
      %s16 = ssub.s32 %s11, 1
      %s17 = ssub.s32 %s11, 2
      %s24 = sadd.s32 1, %s19
      %p25 = scmp.ge.s32.totalorder %s24, 1
      %s26 = scalar_select %p25, 0, %s24
      %s27 = sadd.s32 1, %s18
      %s28 = scalar_select %p25, %s27, %s18
      %p29 = scmp.ge.s32.totalorder %s28, 2
      %s30 = scalar_select %p29, 0, %s28
      %s31 = ssub.s32 %s18, %s30
      %p32 = scmp.eq.s32.totalorder %s31, 0
      %s34 = sadd.s32 %s33, 1
      %s35 = scalar_select %p32, %s33, %s34
      %p38 = pneg %p32
      %p39 = scmp.eq.s32.totalorder %s11, 1
      %p40 = por %p38, %p39
      %p41 = scmp.ne.s32.totalorder %s33, %s36
      %p42 = scmp.eq.s32.totalorder %s11, 0
      %p43 = por %p41, %p42
      %p44 = scmp.ne.s32.totalorder %s33, %s36
      %p45 = scmp.eq.s32.totalorder %s16, 1
      %p46 = por %p44, %p45
      %p47 = scmp.ne.s32.totalorder %s36, %s37
      %p48 = scmp.eq.s32.totalorder %s16, 0
      %p49 = por %p47, %p48
      %p50 = scmp.ne.s32.totalorder %s36, %s37
      %p51 = scmp.eq.s32.totalorder %s17, 1
      %p52 = por %p50, %p51
      %p54 = scmp.ne.s32.totalorder %s37, %s53
      %p55 = scmp.eq.s32.totalorder %s17, 0
      %p56 = por %p54, %p55
      %s58 = sadd.s32 %s57, 1
      %p61 = scmp.eq.s32.totalorder %s11, 1
      %p62 = scmp.ne.s32.totalorder %s57, %s59
      %p63 = scmp.eq.s32.totalorder %s11, 0
      %p64 = por %p62, %p63
      %p65 = scmp.ne.s32.totalorder %s57, %s59
      %p66 = scmp.eq.s32.totalorder %s16, 1
      %p67 = por %p65, %p66
      %p68 = scmp.ne.s32.totalorder %s59, %s60
      %p69 = scmp.eq.s32.totalorder %s16, 0
      %p70 = por %p68, %p69
      %p71 = scmp.ne.s32.totalorder %s59, %s60
      %p72 = scmp.eq.s32.totalorder %s17, 1
      %p73 = por %p71, %p72
      %p75 = scmp.ne.s32.totalorder %s60, %s74
      %p76 = scmp.eq.s32.totalorder %s17, 0
      %p77 = por %p75, %p76
      %s78 = ssub.s32 %s18, %s30
      %s79 = ssub.s32 %s19, %s26
      %s80 = sor.u32 %s78, %s79
      %p81 = scmp.eq.s32.totalorder %s80, 0
      %s83 = sadd.s32 %s82, 1
      %s84 = scalar_select %p81, %s82, %s83
      %p87 = pneg %p81
      %p88 = scmp.eq.s32.totalorder %s11, 1
      %p89 = por %p87, %p88
      %p90 = scmp.ne.s32.totalorder %s82, %s85
      %p91 = scmp.eq.s32.totalorder %s11, 0
      %p92 = por %p90, %p91
      %p93 = scmp.ne.s32.totalorder %s82, %s85
      %p94 = scmp.eq.s32.totalorder %s16, 1
      %p95 = por %p93, %p94
      %p96 = scmp.ne.s32.totalorder %s85, %s86
      %p97 = scmp.eq.s32.totalorder %s16, 0
      %p98 = por %p96, %p97
      %p99 = scmp.ne.s32.totalorder %s85, %s86
      %p100 = scmp.eq.s32.totalorder %s17, 1
      %p101 = por %p99, %p100
      %p103 = scmp.ne.s32.totalorder %s86, %s102
      %p104 = scmp.eq.s32.totalorder %s17, 0
      %p105 = por %p103, %p104
      %p106 = scmp.le.s32.totalorder 1, %s11
      %p107 = scmp.lt.s32.totalorder %s11, 3
      %p108 = pnand %p106, %p107
      %p109 = pneg %p108
      // Predicated region
      $region9: #{tpu_custom_call.1} parent=5 // pred_check
        _
      $region10: #{tpu_custom_call.1} parent=5 // pred_check_branch
        %111 = sbr.rel (%p108) target = $region12
      $region11: #{tpu_custom_call.1} parent=5 // pred_region
        %s112 = ssub.s32 %s11, 1
        // Predicated region
        $region13: #{tpu_custom_call.1} parent=11 // pred_check
          %p113 = pneg %p70
        $region14: #{tpu_custom_call.1} parent=11 // pred_check_branch
          %115 = sbr.rel (%p113) target = $region16
        $region15: #{tpu_custom_call.1} parent=11 // pred_region
          _
        $region16: #{tpu_custom_call.1} parent=11 // pred_fallthru
          _
      $region12: #{tpu_custom_call.1} parent=5 // pred_fallthru
        _
      %p116 = scmp.lt.s32.totalorder %s11, 2
      // Predicated region
      $region17: #{tpu_custom_call.1} parent=5 // pred_check
        %p117 = pneg %p116
      $region18: #{tpu_custom_call.1} parent=5 // pred_check_branch
        %119 = sbr.rel (%p117) target = $region20
      $region19: #{tpu_custom_call.1} parent=5 // pred_region
        // Predicated region
        $region21: #{tpu_custom_call.1} parent=19 // pred_check
          %p120 = pneg %p43
        $region22: #{tpu_custom_call.1} parent=19 // pred_check_branch
          %122 = sbr.rel (%p120) target = $region24
        $region23: #{tpu_custom_call.1} parent=19 // pred_region
          %p123 = scmp.lt.s32.totalorder %s18, 1
          %s124 = scalar_select %p123, %s18, 1
          %s125 = smul.addr %s124, 2
          %s126 = scalar_lea.vmem %s0, %s125
        $region24: #{tpu_custom_call.1} parent=19 // pred_fallthru
          _
      $region20: #{tpu_custom_call.1} parent=5 // pred_fallthru
        _
      %p127 = scmp.le.s32.totalorder 1, %s11
      %p128 = scmp.lt.s32.totalorder %s11, 3
      %p129 = pnand %p127, %p128
      %p130 = pneg %p129
      // Predicated region
      $region25: #{tpu_custom_call.1} parent=5 // pred_check
        _
      $region26: #{tpu_custom_call.1} parent=5 // pred_check_branch
        %132 = sbr.rel (%p129) target = $region28
      $region27: #{tpu_custom_call.1} parent=5 // pred_region
        %s133 = ssub.s32 %s11, 1
        %p134 = scmp.lt.s32.totalorder %s20, 1
        %s135 = scalar_select %p134, %s20, 1
        %s136 = smul.addr %s135, 2
        %s137 = scalar_lea.vmem %s0, %s136
        %p138 = pneg %p49
        %p139 = pneg %p46
        %p140 = pneg %p70
        %p141 = pneg %p67
        %p142 = pneg %p98
        %p143 = pneg %p95
        %s144 = sand.u32 %s85, 1
        %s145 = scalar_lea.sflag [#allocation3], %s144
        %s146 = sand.u32 %s85, 1
        %s147 = smul.addr %s146, 8
        %s148 = scalar_lea.vmem [#allocation2], %s147
        %p149 = scmp.lt.s32.totalorder %s20, 1
        %s150 = scalar_select %p149, %s20, 1
        %s151 = smul.addr %s150, 2
        %s152 = scalar_lea.vmem %s0, %s151
        %v154 = vld [vmem:[%s152] sm:$0x3]
        %v155 = vld [vmem:[%s1] sm:$0xf]
        %s156 = scalar_lea.vmem %s1, 4
        %v157 = vld [vmem:[%s156] sm:$0xf]
        %159 = vst [vmem:[#allocation1] ss:$4 sm:$0xff] %v154
        %v160 = vld.sshfl [vmem:[#allocation1] sm:$0xff pattern:$0x73625140]
        %162 = vrot.lane.b32.xlu0 %v160, 127
        %v163 = vpop.permute.xlu0 %162
        %vm164 = vcmask 31744
        %v166 = vsel %vm164, %v157, 0
        %vm168 = vcmask 1041408
        %v170 = vsel %vm168, %v163, 0
        %172 = vmatpush.bf16.msra.mxu0 0
        %173 = vmatpush.bf16.msra.mxu0 0
        %174 = vmatpush.bf16.msra.mxu0 0
        %175 = vmatpush.bf16.msra.mxu0 0
        %176 = vmatpush.bf16.msra.mxu0 0
        %177 = vmatpush.bf16.msra.mxu0 0
        %178 = vmatpush.bf16.msra.mxu0 0
        %179 = vmatpush.bf16.msra.mxu0 %v170
        %180 = vmatmul.bf16.gmra.mxu0 %v166
        %v181 = vpop.f32.mrf.mxu0
        %v182 = vadd.f32 0.0, %v181
        %v183 = vpop.f32.mrf.mxu0
        %184 = vdwg.mxu0
        %v186 = vsel %vm164, %v155, 0
        %v188 = vsel %vm168, %v154, 0
        %190 = vmatpush.bf16.msra.mxu0 0
        %191 = vmatpush.bf16.msra.mxu0 0
        %192 = vmatpush.bf16.msra.mxu0 0
        %193 = vmatpush.bf16.msra.mxu0 0
        %194 = vmatpush.bf16.msra.mxu0 0
        %195 = vmatpush.bf16.msra.mxu0 0
        %196 = vmatpush.bf16.msra.mxu0 0
        %197 = vmatpush.bf16.msra.mxu0 %v188
        %198 = vmatmul.bf16.gmra.mxu0 %v186
        %v199 = vpop.f32.mrf.mxu0
        %v200 = vadd.f32 %v182, %v199
        %v201 = vpop.f32.mrf.mxu0
        %202 = vdwg.mxu0
        %s203 = scalar_lea.vmem %s1, 8
        %v204 = vld [vmem:[%s203] sm:$0xf]
        %205 = vst [vmem:[#allocation1] ss:$4 sm:$0xff] %v154
        %v206 = vld.sshfl [vmem:[#allocation1] sm:$0xff pattern:$0x73625140]
        %208 = vrot.lane.b32.xlu0 %v206, 126
        %v209 = vpop.permute.xlu0 %208
        %v211 = vsel %vm164, %v204, 0
        %v214 = vsel %vm168, %v209, 0
        %216 = vmatpush.bf16.msra.mxu0 0
        %217 = vmatpush.bf16.msra.mxu0 0
        %218 = vmatpush.bf16.msra.mxu0 0
        %219 = vmatpush.bf16.msra.mxu0 0
        %220 = vmatpush.bf16.msra.mxu0 0
        %221 = vmatpush.bf16.msra.mxu0 0
        %222 = vmatpush.bf16.msra.mxu0 0
        %223 = vmatpush.bf16.msra.mxu0 %v214
        %224 = vmatmul.bf16.gmra.mxu0 %v211
        %v225 = vpop.f32.mrf.mxu0
        %v226 = vadd.f32 0.0, %v225
        %v227 = vpop.f32.mrf.mxu0
        %228 = vdwg.mxu0
        %v229 = vadd.f32 %v200, %v226
        %vm230 = vcmask 113664
        %231 = vst.msk [vmem:[%s148] sm:$0xff] %vm230, %v229
        %s232 = sand.u32 %s85, 1
        %s233 = scalar_lea.sflag [#allocation3], %s232
        %s234 = sand.u32 %s85, 1
        %s235 = smul.addr %s234, 8
        %s236 = scalar_lea.vmem [#allocation2], %s235
        // Predicated region
        $region29: #{tpu_custom_call.1} parent=27 // pred_check
          %p237 = pneg %p95
        $region30: #{tpu_custom_call.1} parent=27 // pred_check_branch
          %239 = sbr.rel (%p237) target = $region32
        $region31: #{tpu_custom_call.1} parent=27 // pred_region
          %241 = vsyncadd %s233, 0
          %s242 = sadd.s32 %s21, %s20
          %s243 = smul.addr %s242, 8
          %s244 = scalar_lea.hbm %s2, %s243
          %s246 = sshll.u32 %s236, 4
          %s247 = int_to_ptr.vmem [resolvable:$true] %s246
          %s248 = sshll.u32 %s244, 4
          %s249 = int_to_ptr.hbm [resolvable:$true] %s248
          %251 = dma.vmem_to_hbm [thread:$0]  %s247, 128, %s249, %s233
        $region32: #{tpu_custom_call.1} parent=27 // pred_fallthru
          _
      $region28: #{tpu_custom_call.1} parent=5 // pred_fallthru
        _
      %p252 = scmp.le.s32.totalorder 2, %s11
      // Predicated region
      $region33: #{tpu_custom_call.1} parent=5 // pred_check
        %p253 = pneg %p252
      $region34: #{tpu_custom_call.1} parent=5 // pred_check_branch
        %255 = sbr.rel (%p253) target = $region36
      $region35: #{tpu_custom_call.1} parent=5 // pred_region
        %s256 = ssub.s32 %s11, 2
        // Predicated region
        $region37: #{tpu_custom_call.1} parent=35 // pred_check
          %p257 = pneg %p101
        $region38: #{tpu_custom_call.1} parent=35 // pred_check_branch
          %259 = sbr.rel (%p257) target = $region40
        $region39: #{tpu_custom_call.1} parent=35 // pred_region
          %s260 = sand.u32 %s86, 1
          %s261 = scalar_lea.sflag [#allocation3], %s260
          %s262 = sand.u32 %s86, 1
          %s263 = smul.addr %s262, 8
          %s264 = scalar_lea.vmem [#allocation2], %s263
          %266 = dma.done %s261, 128
        $region40: #{tpu_custom_call.1} parent=35 // pred_fallthru
          _
      $region36: #{tpu_custom_call.1} parent=5 // pred_fallthru
        _
    $region6: #{tpu_custom_call.1} parent=1 // loop_footer
      %s15 = sadd.s32 1, %s11
    $region7: #{tpu_custom_call.1} parent=1 // loop_footer_branch
      %10 = sbr.rel target = $region3
    $region8: #{tpu_custom_call.1} parent=1 // loop_exit
      _
    %267 = vsyncpa [#allocation3], 1
    %s268 = scalar_lea.sflag [#allocation3], 1
    %269 = vsyncpa %s268, 1

</llo_original>
